<compile_context>
chip_gen: v6e
topology: v6e:2x2x1
jax: 0.10.0
libtpu: 0.0.40
codegen_flags: <defaults>
</compile_context>

<pallas_src>
import functools

import jax
import jax.numpy as jnp
from jax.experimental import pallas as pl
from jax.experimental.pallas import tpu as pltpu


def _round_up(x, m):
    return (x + m - 1) // m * m


def _ff_fused_kernel(x_ref, t_ref, w1_ref, w2_ref, w3_ref, b_ref,
                     o_ref, psum_ref, *,
                     tb, batch, n_tiles, h_p, out_p, needs_mask):
    """One batch tile: 3-layer MLP (bf16 MXU / f32 acc) + partial MSE sum."""
    # Packed biases: row 0 -> b1, row 1 -> b2, row 2 -> b3 (f32, zero-padded).
    b1 = b_ref[0:1, 0:h_p]
    b2 = b_ref[1:2, 0:h_p]
    b3 = b_ref[2:3, 0:out_p]

    # Layer 1: Linear (bf16 in, f32 acc) + Tanh (f32 on VPU/EUP)
    h = jnp.dot(x_ref[...], w1_ref[...], preferred_element_type=jnp.float32)
    h = jnp.tanh(h + b1)
    # Layer 2
    h = jnp.dot(h.astype(jnp.bfloat16), w2_ref[...],
                preferred_element_type=jnp.float32)
    h = jnp.tanh(h + b2)
    # Layer 3 (no activation)
    out = jnp.dot(h.astype(jnp.bfloat16), w3_ref[...],
                  preferred_element_type=jnp.float32) + b3
    o_ref[...] = out  # lane-dense (multiple-of-128 wide) f32 store

    # Fused MSE partial sum. Padded feature columns of `out` and the target
    # are exactly zero (zero-padded weights/biases/target), so they add
    # nothing. Padded *rows* can only exist in the last tile; the mask is
    # emitted only there, and not at all when the batch needed no padding.
    def _unmasked():
        diff = t_ref[...] - out
        psum_ref[0, 0] = jnp.sum(diff * diff)

    def _masked():
        i = pl.program_id(0)
        row = jax.lax.broadcasted_iota(jnp.int32, out.shape, 0)
        valid = (row + i * tb) < batch
        diff = jnp.where(valid, t_ref[...] - out, 0.0)
        psum_ref[0, 0] = jnp.sum(diff * diff)

    if not needs_mask:
        _unmasked()
    elif n_tiles == 1:
        _masked()
    else:
        i = pl.program_id(0)
        pl.when(i < n_tiles - 1)(_unmasked)
        pl.when(i == n_tiles - 1)(_masked)


def prepare_params(params, input_dims, hidden_dims, output_dim):
    """Zero-pad feature dims to multiples of 128 (lane-dense), cast the matmul
    weights to bf16, and pack the three biases into one f32 operand."""
    w1, b1, w2, b2, w3, b3 = params
    in_p = _round_up(input_dims, 128)
    h_p = _round_up(hidden_dims, 128)
    out_p = _round_up(output_dim, 128)
    pmax = max(h_p, out_p)

    def pad2(a, r, c):
        return jnp.pad(a, ((0, r - a.shape[0]), (0, c - a.shape[1])))

    w1p = pad2(w1, in_p, h_p).astype(jnp.bfloat16)
    w2p = pad2(w2, h_p, h_p).astype(jnp.bfloat16)
    w3p = pad2(w3, h_p, out_p).astype(jnp.bfloat16)

    b_pack = jnp.zeros((3, pmax), jnp.float32)
    b_pack = b_pack.at[0, :hidden_dims].set(b1.reshape(-1))
    b_pack = b_pack.at[1, :hidden_dims].set(b2.reshape(-1))
    b_pack = b_pack.at[2, :output_dim].set(b3.reshape(-1))
    return (w1p, w2p, w3p, b_pack), (in_p, h_p, out_p)


def ff_forward_and_loss(x, target, params):
    """Fused forward + forward_loss.

    x:      (B, input_dims) f32
    target: (B, output_dim) f32     (the `in_data` of forward_loss)
    Returns (decoded_padded (B_pad, out_p) f32, loss scalar f32).
    The caller slices decoded_padded[:B, :output_dim] when it needs the
    compact view; doing that slice inside the jit'd graph would add an extra
    HBM copy ~8x the useful data at out_dim=16.
    """
    batch, input_dims = x.shape
    out_dim = target.shape[1]
    hidden_dims = params[0].shape[1]

    (w1p, w2p, w3p, b_pack), (in_p, h_p, out_p) = prepare_params(
        params, input_dims, hidden_dims, out_dim)

    # Batch tiling:
    #  * rows padded to a multiple of 16 (native bf16 (16,128) x tile),
    #  * batch tile up to 512 rows (per-step VMEM ~1.3 MiB + ~96 KiB resident
    #    weights: trivially within budget on v5e/v6e/v7x),
    #  * with enough batch, >=2 tiles so the "parallel" axis can shard across
    #    both TensorCores on v7x.
    b_pad = _round_up(batch, 16)
    tb = min(b_pad, 512)
    if b_pad >= 32:
        tb = min(tb, _round_up(-(-b_pad // 2), 16))
    b_pad = _round_up(b_pad, tb)
    n_tiles = b_pad // tb
    needs_mask = b_pad != batch

    x_p = jnp.pad(x, ((0, b_pad - batch), (0, in_p - input_dims))
                  ).astype(jnp.bfloat16)
    t_p = jnp.pad(target, ((0, b_pad - batch), (0, out_p - out_dim)))

    flops = 2 * b_pad * (in_p * h_p + h_p * h_p + h_p * out_p)
    bytes_accessed = (
        x_p.size * 2 + t_p.size * 4
        + (w1p.size + w2p.size + w3p.size) * 2 + b_pack.size * 4
        + b_pad * out_p * 4 + n_tiles * 4)

    kernel = functools.partial(
        _ff_fused_kernel, tb=tb, batch=batch, n_tiles=n_tiles,
        h_p=h_p, out_p=out_p, needs_mask=needs_mask)

    batch_spec = lambda cols: pl.BlockSpec((tb, cols), lambda i: (i, 0))
    full_spec = lambda a: pl.BlockSpec(a.shape, lambda i: (0, 0))

    out_pad, psums = pl.pallas_call(
        kernel,
        out_shape=(jax.ShapeDtypeStruct((b_pad, out_p), jnp.float32),
                   jax.ShapeDtypeStruct((n_tiles, 1), jnp.float32)),
        grid=(n_tiles,),
        in_specs=[batch_spec(in_p), batch_spec(out_p),
                  full_spec(w1p), full_spec(w2p), full_spec(w3p),
                  full_spec(b_pack)],
        out_specs=(batch_spec(out_p),
                   pl.BlockSpec((1, 1), lambda i: (i, 0),
                                memory_space=pltpu.SMEM)),
        compiler_params=pltpu.CompilerParams(
            dimension_semantics=("parallel",)),
        cost_estimate=pl.CostEstimate(
            flops=flops,
            transcendentals=2 * b_pad * h_p,
            bytes_accessed=bytes_accessed),
    )(x_p, t_p, w1p, w2p, w3p, b_pack)

    loss = jnp.sum(psums) / (batch * out_dim)
    return out_pad, loss


def init_params(key, input_dims, hidden_dims, output_dim):
    """Deterministic PyTorch-style (uniform +/- 1/sqrt(fan_in)) init.
    Weights stored as [in_features, out_features] (transposed vs. torch)."""
    ks = jax.random.split(key, 6)

    def linear(kw, kb, fan_in, fan_out):
        bound = 1.0 / jnp.sqrt(jnp.float32(fan_in))
        w = jax.random.uniform(kw, (fan_in, fan_out), jnp.float32, -bound, bound)
        b = jax.random.uniform(kb, (1, fan_out), jnp.float32, -bound, bound)
        return w, b

    w1, b1 = linear(ks[0], ks[1], input_dims, hidden_dims)
    w2, b2 = linear(ks[2], ks[3], hidden_dims, hidden_dims)
    w3, b3 = linear(ks[4], ks[5], hidden_dims, output_dim)
    return (w1, b1, w2, b2, w3, b3)


def ff_forward_ref(x, params):
    """Pure-f32 JAX reference."""
    w1, b1, w2, b2, w3, b3 = params
    h = jnp.tanh(x @ w1 + b1)
    h = jnp.tanh(h @ w2 + b2)
    return h @ w3 + b3


def ff_forward_ref_bf16(x, params):
    """Reference matching the kernel's bf16-in / f32-accumulate matmuls."""
    w1, b1, w2, b2, w3, b3 = params
    d = lambda a, b_: jnp.dot(a.astype(jnp.bfloat16), b_.astype(jnp.bfloat16),
                              preferred_element_type=jnp.float32)
    h = jnp.tanh(d(x, w1) + b1)
    h = jnp.tanh(d(h, w2) + b2)
    return d(h, w3) + b3


if __name__ == "__main__":
    # TODO(synk): the upstream FF.forward is unimplemented (print + sleep);
    # we expose the fused MLP (`self.ff`) + `forward_loss` semantics instead.
    batch = 8
    input_dims = 32
    hidden_dims = 32   # config.decoder.hidden_dims
    output_dim = 16

    key = jax.random.PRNGKey(0)
    k_x, k_p, k_t = jax.random.split(key, 3)

    x = jax.random.normal(k_x, (batch, input_dims), dtype=jnp.float32)
    params = init_params(k_p, input_dims, hidden_dims, output_dim)
    target = jax.random.normal(k_t, (batch, output_dim), dtype=jnp.float32)

    decoded_pad, loss = jax.block_until_ready(
        jax.jit(ff_forward_and_loss)(x, target, params))
    decoded = decoded_pad[:batch, :output_dim]   # compact view (outside jit)

    # Tight check vs. a reference doing the same bf16-input/f32-accum matmuls.
    ref_bf16 = ff_forward_ref_bf16(x, params)
    ref_loss_bf16 = jnp.mean((target - ref_bf16) ** 2)
    assert jnp.allclose(decoded, ref_bf16, atol=1e-3, rtol=1e-3), \
        "decoded mismatch (bf16-matched ref)"
    assert jnp.allclose(loss, ref_loss_bf16, atol=1e-3, rtol=1e-3), \
        "loss mismatch (bf16-matched ref)"

    # Loose sanity check vs. the pure-f32 reference (bf16 MXU inputs).
    ref_f32 = ff_forward_ref(x, params)
    ref_loss_f32 = jnp.mean((target - ref_f32) ** 2)
    assert jnp.allclose(decoded, ref_f32, atol=5e-2, rtol=5e-2), \
        "decoded mismatch (f32 ref)"
    assert jnp.allclose(loss, ref_loss_f32, atol=5e-2, rtol=5e-2), \
        "loss mismatch (f32 ref)"

    print("KERNEL_OK")
</pallas_src>

<mosaic_0001>
module attributes {stable_mosaic.version = 11 : i64} {
  func.func @_ff_fused_kernel(%arg0: i32, %arg1: memref<16x128xbf16, #tpu.memory_space<vmem>>, %arg2: memref<16x128xf32, #tpu.memory_space<vmem>>, %arg3: memref<128x128xbf16, #tpu.memory_space<vmem>>, %arg4: memref<128x128xbf16, #tpu.memory_space<vmem>>, %arg5: memref<128x128xbf16, #tpu.memory_space<vmem>>, %arg6: memref<3x128xf32, #tpu.memory_space<vmem>>, %arg7: memref<16x128xf32, #tpu.memory_space<vmem>>, %arg8: memref<1x1xf32, #tpu.memory_space<smem>>) attributes {dimension_semantics = [#tpu.dimension_semantics<parallel>], iteration_bounds = array<i64: 1>, scalar_prefetch = 0 : i64, scratch_operands = 0 : i64, tpu.core_type = #tpu.core_type<tc>, window_params = [{transform_indices = @transform_0, window_bounds = array<i64: 16, 128>}, {transform_indices = @transform_1, window_bounds = array<i64: 16, 128>}, {pipeline_mode = #tpu.pipeline_mode<synchronous>, transform_indices = @transform_2, window_bounds = array<i64: 128, 128>}, {pipeline_mode = #tpu.pipeline_mode<synchronous>, transform_indices = @transform_3, window_bounds = array<i64: 128, 128>}, {pipeline_mode = #tpu.pipeline_mode<synchronous>, transform_indices = @transform_4, window_bounds = array<i64: 128, 128>}, {pipeline_mode = #tpu.pipeline_mode<synchronous>, transform_indices = @transform_5, window_bounds = array<i64: 3, 128>}, {transform_indices = @transform_6, window_bounds = array<i64: 16, 128>}, {transform_indices = @transform_7, window_bounds = array<i64: 1, 1>}]} {
    %c0 = arith.constant 0 : index
    %c0_0 = arith.constant 0 : index
    %0 = vector.load %arg6[%c0, %c0_0] : memref<3x128xf32, #tpu.memory_space<vmem>>, vector<1x128xf32>
    %c1 = arith.constant 1 : index
    %c0_1 = arith.constant 0 : index
    %1 = vector.load %arg6[%c1, %c0_1] : memref<3x128xf32, #tpu.memory_space<vmem>>, vector<1x128xf32>
    %c2 = arith.constant 2 : index
    %c0_2 = arith.constant 0 : index
    %2 = vector.load %arg6[%c2, %c0_2] : memref<3x128xf32, #tpu.memory_space<vmem>>, vector<1x128xf32>
    %c0_3 = arith.constant 0 : index
    %c0_4 = arith.constant 0 : index
    %3 = vector.load %arg1[%c0_3, %c0_4] : memref<16x128xbf16, #tpu.memory_space<vmem>>, vector<16x128xbf16>
    %c0_5 = arith.constant 0 : index
    %c0_6 = arith.constant 0 : index
    %4 = vector.load %arg3[%c0_5, %c0_6] : memref<128x128xbf16, #tpu.memory_space<vmem>>, vector<128x128xbf16>
    %cst = arith.constant dense<0.000000e+00> : vector<16x128xf32>
    %5 = tpu.matmul %3, %4, %cst {dimension_numbers = #tpu.dot_dimension_numbers<[1], [0], [0], [1], [0, 0, 1, 1], [], []>} : vector<16x128xbf16>, vector<128x128xbf16>, vector<16x128xf32> -> vector<16x128xf32>
    %6 = vector.broadcast %0 : vector<1x128xf32> to vector<16x128xf32>
    %7 = arith.addf %5, %6 : vector<16x128xf32>
    %8 = math.tanh %7 : vector<16x128xf32>
    %9 = arith.truncf %8 : vector<16x128xf32> to vector<16x128xbf16>
    %c0_7 = arith.constant 0 : index
    %c0_8 = arith.constant 0 : index
    %10 = vector.load %arg4[%c0_7, %c0_8] : memref<128x128xbf16, #tpu.memory_space<vmem>>, vector<128x128xbf16>
    %cst_9 = arith.constant dense<0.000000e+00> : vector<16x128xf32>
    %11 = tpu.matmul %9, %10, %cst_9 {dimension_numbers = #tpu.dot_dimension_numbers<[1], [0], [0], [1], [0, 0, 1, 1], [], []>} : vector<16x128xbf16>, vector<128x128xbf16>, vector<16x128xf32> -> vector<16x128xf32>
    %12 = vector.broadcast %1 : vector<1x128xf32> to vector<16x128xf32>
    %13 = arith.addf %11, %12 : vector<16x128xf32>
    %14 = math.tanh %13 : vector<16x128xf32>
    %15 = arith.truncf %14 : vector<16x128xf32> to vector<16x128xbf16>
    %c0_10 = arith.constant 0 : index
    %c0_11 = arith.constant 0 : index
    %16 = vector.load %arg5[%c0_10, %c0_11] : memref<128x128xbf16, #tpu.memory_space<vmem>>, vector<128x128xbf16>
    %cst_12 = arith.constant dense<0.000000e+00> : vector<16x128xf32>
    %17 = tpu.matmul %15, %16, %cst_12 {dimension_numbers = #tpu.dot_dimension_numbers<[1], [0], [0], [1], [0, 0, 1, 1], [], []>} : vector<16x128xbf16>, vector<128x128xbf16>, vector<16x128xf32> -> vector<16x128xf32>
    %18 = vector.broadcast %2 : vector<1x128xf32> to vector<16x128xf32>
    %19 = arith.addf %17, %18 : vector<16x128xf32>
    %c0_13 = arith.constant 0 : index
    %c0_14 = arith.constant 0 : index
    %20 = vector.load %arg7[%c0_13, %c0_14] : memref<16x128xf32, #tpu.memory_space<vmem>>, vector<16x128xf32>
    tpu.vector_store %arg7[%c0_13, %c0_14], %19 {strides = array<i32>} : memref<16x128xf32, #tpu.memory_space<vmem>>, vector<16x128xf32>,
    %21 = tpu.iota {dimensions = array<i32: 0>} : vector<16x128xi32>
    %c16_i32 = arith.constant 16 : i32
    %22 = arith.muli %arg0, %c16_i32 : i32
    %23 = vector.broadcast %22 : i32 to vector<16x128xi32>
    %24 = arith.addi %21, %23 : vector<16x128xi32>
    %c8_i32 = arith.constant 8 : i32
    %25 = vector.broadcast %c8_i32 : i32 to vector<16x128xi32>
    %26 = arith.cmpi slt, %24, %25 : vector<16x128xi32>
    %c0_15 = arith.constant 0 : index
    %c0_16 = arith.constant 0 : index
    %27 = vector.load %arg2[%c0_15, %c0_16] : memref<16x128xf32, #tpu.memory_space<vmem>>, vector<16x128xf32>
    %28 = arith.subf %27, %19 : vector<16x128xf32>
    %cst_17 = arith.constant 0.000000e+00 : f32
    %29 = vector.broadcast %cst_17 : f32 to vector<16x128xf32>
    %30 = arith.select %26, %28, %29 : vector<16x128xi1>, vector<16x128xf32>
    %31 = arith.mulf %30, %30 : vector<16x128xf32>
    %32 = vector.shape_cast %31 : vector<16x128xf32> to vector<1x16x128xf32>
    %cst_18 = arith.constant dense<0.000000e+00> : vector<1xf32>
    %33 = vector.multi_reduction <add>, %32, %cst_18 [1, 2] : vector<1x16x128xf32> to vector<1xf32>
    %34 = vector.shape_cast %33 : vector<1xf32> to vector<1x1x1xf32>
    %35 = vector.extract %34[0, 0, 0] : f32 from vector<1x1x1xf32>
    %c0_19 = arith.constant 0 : index
    %c0_20 = arith.constant 0 : index
    %36 = memref.load %arg8[%c0_19, %c0_20] : memref<1x1xf32, #tpu.memory_space<smem>>
    memref.store %35, %arg8[%c0_19, %c0_20] : memref<1x1xf32, #tpu.memory_space<smem>>
    return
  }
  func.func @transform_0(%arg0: i32) -> (i32, i32) {
    %c0_i32 = arith.constant 0 : i32
    %c0_i32_0 = arith.constant 0 : i32
    return %arg0, %c0_i32 : i32, i32
  }
  func.func @transform_1(%arg0: i32) -> (i32, i32) {
    %c0_i32 = arith.constant 0 : i32
    %c0_i32_0 = arith.constant 0 : i32
    return %arg0, %c0_i32 : i32, i32
  }
  func.func @transform_2(%arg0: i32) -> (i32, i32) {
    %c0_i32 = arith.constant 0 : i32
    %c0_i32_0 = arith.constant 0 : i32
    %c0_i32_1 = arith.constant 0 : i32
    return %c0_i32, %c0_i32_0 : i32, i32
  }
  func.func @transform_3(%arg0: i32) -> (i32, i32) {
    %c0_i32 = arith.constant 0 : i32
    %c0_i32_0 = arith.constant 0 : i32
    %c0_i32_1 = arith.constant 0 : i32
    return %c0_i32, %c0_i32_0 : i32, i32
  }
  func.func @transform_4(%arg0: i32) -> (i32, i32) {
    %c0_i32 = arith.constant 0 : i32
    %c0_i32_0 = arith.constant 0 : i32
    %c0_i32_1 = arith.constant 0 : i32
    return %c0_i32, %c0_i32_0 : i32, i32
  }
  func.func @transform_5(%arg0: i32) -> (i32, i32) {
    %c0_i32 = arith.constant 0 : i32
    %c0_i32_0 = arith.constant 0 : i32
    %c0_i32_1 = arith.constant 0 : i32
    return %c0_i32, %c0_i32_0 : i32, i32
  }
  func.func @transform_6(%arg0: i32) -> (i32, i32) {
    %c0_i32 = arith.constant 0 : i32
    %c0_i32_0 = arith.constant 0 : i32
    return %arg0, %c0_i32 : i32, i32
  }
  func.func @transform_7(%arg0: i32) -> (i32, i32) {
    %c0_i32 = arith.constant 0 : i32
    %c0_i32_0 = arith.constant 0 : i32
    return %arg0, %c0_i32 : i32, i32
  }
}

</mosaic_0001>

<llo_original>
// kernel: ff_forward_and_loss.1
$region0: #{ff_forward_and_loss.1}
  #allocation0 [shape = 'u32[]', space=smem, size = 0x4, offset = 0x4, fixed_abs, tag = 'smem constant byte address 0x4 - core index']
  #allocation1 [shape = 'u32[144,128]{1,0:T(1,128)}', space=vmem, size = 0x12000, scoped, tag = 'internal scratch']
  %s0 = inlined_call_operand.vmem [shape: bf16[16,128], index: 0, kind: input, shape index: {}]
  %s1 = inlined_call_operand.vmem [shape: f32[16,128], index: 1, kind: input, shape index: {}]
  %s2 = inlined_call_operand.vmem [shape: bf16[128,128], index: 2, kind: input, shape index: {}]
  %s3 = inlined_call_operand.vmem [shape: bf16[128,128], index: 3, kind: input, shape index: {}]
  %s4 = inlined_call_operand.vmem [shape: bf16[128,128], index: 4, kind: input, shape index: {}]
  %s5 = inlined_call_operand.vmem [shape: f32[3,128], index: 5, kind: input, shape index: {}]
  %s6 = inlined_call_operand.hbm [shape: f32[16,128], index: 6, kind: output, shape index: {0}]
  %s7 = inlined_call_operand.hbm [shape: f32[1,1], index: 7, kind: output, shape index: {1}]
  %8 = xla_tuple %s6, %s7
  %s9 = sld [smem:[#allocation0]]
  $region42: #{ff_forward_and_loss.1} parent=0
    _
  %s11 = ssub.s32 1, %s9
  %s12 = scalar_select 0, %s11, %s9
  $region1: #{ff_forward_and_loss.1} parent=0
    #allocation2 [shape = 'u8[8192]{0}', space=vmem, size = 0x2000, scoped, tag = 'output window, operand 0, single buffered']
    #allocation3 [shape = 's32[1]{0}', space=sflag, size = 0x4, scoped, tag = 'scoped memory for ff_forward_and_loss.1']
    #allocation4 [shape = 's32[1]{0}', space=sflag, size = 0x4, scoped, tag = 'scoped memory for ff_forward_and_loss.1']
    #allocation5 [shape = 'u8[512]{0}', space=smem, size = 0x200, scoped, tag = 'output window, operand 1, single buffered']
    %13 = vsyncpa [#allocation3], 0
    %14 = vsyncpa [#allocation4], 0
    // Predicated region
    $region2: #{ff_forward_and_loss.1} parent=1 // pred_check
      _
    $region3: #{ff_forward_and_loss.1} parent=1 // pred_check_branch
      %16 = sbr.rel (0) target = $region5
    $region4: #{ff_forward_and_loss.1} parent=1 // pred_region
      _
    $region5: #{ff_forward_and_loss.1} parent=1 // pred_fallthru
      _
    // Predicated region
    $region6: #{ff_forward_and_loss.1} parent=1 // pred_check
      _
    $region7: #{ff_forward_and_loss.1} parent=1 // pred_check_branch
      %18 = sbr.rel (0) target = $region9
    $region8: #{ff_forward_and_loss.1} parent=1 // pred_region
      _
    $region9: #{ff_forward_and_loss.1} parent=1 // pred_fallthru
      _
    // Predicated region
    $region10: #{ff_forward_and_loss.1} parent=1 // pred_check
      _
    $region11: #{ff_forward_and_loss.1} parent=1 // pred_check_branch
      %20 = sbr.rel (0) target = $region13
    $region12: #{ff_forward_and_loss.1} parent=1 // pred_region
      _
    $region13: #{ff_forward_and_loss.1} parent=1 // pred_fallthru
      _
    // Predicated region
    $region14: #{ff_forward_and_loss.1} parent=1 // pred_check
      _
    $region15: #{ff_forward_and_loss.1} parent=1 // pred_check_branch
      %22 = sbr.rel (0) target = $region17
    $region16: #{ff_forward_and_loss.1} parent=1 // pred_region
      _
    $region17: #{ff_forward_and_loss.1} parent=1 // pred_fallthru
      _
    // Predicated region
    $region18: #{ff_forward_and_loss.1} parent=1 // pred_check
      _
    $region19: #{ff_forward_and_loss.1} parent=1 // pred_check_branch
      %24 = sbr.rel (0) target = $region21
    $region20: #{ff_forward_and_loss.1} parent=1 // pred_region
      _
    $region21: #{ff_forward_and_loss.1} parent=1 // pred_fallthru
      _
    // Predicated region
    $region22: #{ff_forward_and_loss.1} parent=1 // pred_check
      _
    $region23: #{ff_forward_and_loss.1} parent=1 // pred_check_branch
      %26 = sbr.rel (0) target = $region25
    $region24: #{ff_forward_and_loss.1} parent=1 // pred_region
      _
    $region25: #{ff_forward_and_loss.1} parent=1 // pred_fallthru
      _
    %v28 = vld [vmem:[%s5] sm:$0x1]
    %v29 = vld [vmem:[%s5 + $0x1] sm:$0x1]
    %v30 = vld [vmem:[%s5 + $0x2] sm:$0x1]
    %v31 = vld [vmem:[%s0] sm:$0xf]
    %v32 = vld [vmem:[%s0 + $0x4] sm:$0xf]
    %v33 = vld [vmem:[%s2] sm:$0xf]
    %v34 = vld [vmem:[%s2 + $0x4] sm:$0xf]
    %v35 = vld [vmem:[%s2 + $0x8] sm:$0xf]
    %v36 = vld [vmem:[%s2 + $0xc] sm:$0xf]
    %v37 = vld [vmem:[%s2 + $0x10] sm:$0xf]
    %v38 = vld [vmem:[%s2 + $0x14] sm:$0xf]
    %v39 = vld [vmem:[%s2 + $0x18] sm:$0xf]
    %v40 = vld [vmem:[%s2 + $0x1c] sm:$0xf]
    %v41 = vld [vmem:[%s2 + $0x20] sm:$0xf]
    %v42 = vld [vmem:[%s2 + $0x24] sm:$0xf]
    %v43 = vld [vmem:[%s2 + $0x28] sm:$0xf]
    %v44 = vld [vmem:[%s2 + $0x2c] sm:$0xf]
    %v45 = vld [vmem:[%s2 + $0x30] sm:$0xf]
    %v46 = vld [vmem:[%s2 + $0x34] sm:$0xf]
    %v47 = vld [vmem:[%s2 + $0x38] sm:$0xf]
    %v48 = vld [vmem:[%s2 + $0x3c] sm:$0xf]
    %v49 = vlaneseq
    %v50 = vshrl.u32 %v49, 7
    %v51 = vsub.s32 0, %v50
    %v52 = vrot.slane %v28, %v51
    %v55 = vunpack.c.l.b16 %v31
    %v56 = vunpack.c.l.b16 %v32
    %v57 = vpack.c.b16 %v56, %v55
    %v75 = vunpack.c.l.b16 %v33
    %v76 = vunpack.c.l.b16 %v34
    %v77 = vunpack.c.l.b16 %v35
    %v78 = vunpack.c.l.b16 %v36
    %v79 = vunpack.c.l.b16 %v37
    %v80 = vunpack.c.l.b16 %v38
    %v81 = vunpack.c.l.b16 %v39
    %v82 = vunpack.c.l.b16 %v40
    %v83 = vunpack.c.l.b16 %v41
    %v84 = vunpack.c.l.b16 %v42
    %v85 = vunpack.c.l.b16 %v43
    %v86 = vunpack.c.l.b16 %v44
    %v87 = vunpack.c.l.b16 %v45
    %v88 = vunpack.c.l.b16 %v46
    %v89 = vunpack.c.l.b16 %v47
    %v90 = vunpack.c.l.b16 %v48
    %v91 = vpack.c.b16 %v76, %v75
    %v92 = vpack.c.b16 %v78, %v77
    %v93 = vpack.c.b16 %v80, %v79
    %v94 = vpack.c.b16 %v82, %v81
    %v95 = vpack.c.b16 %v84, %v83
    %v96 = vpack.c.b16 %v86, %v85
    %v97 = vpack.c.b16 %v88, %v87
    %v98 = vpack.c.b16 %v90, %v89
    %107 = vmatprep.subr.bf16.mxu0 0
    %108 = vmatpush1.bf16.msra.mxu0 %v98
    %109 = vmatprep.subr.bf16.mxu0 0
    %110 = vmatpush1.bf16.msra.mxu0 %v97
    %111 = vmatprep.subr.bf16.mxu0 0
    %112 = vmatpush1.bf16.msra.mxu0 %v96
    %113 = vmatprep.subr.bf16.mxu0 0
    %114 = vmatpush1.bf16.msra.mxu0 %v95
    %115 = vmatprep.subr.bf16.mxu0 0
    %116 = vmatpush1.bf16.msra.mxu0 %v94
    %117 = vmatprep.subr.bf16.mxu0 0
    %118 = vmatpush1.bf16.msra.mxu0 %v93
    %119 = vmatprep.subr.bf16.mxu0 0
    %120 = vmatpush1.bf16.msra.mxu0 %v92
    %121 = vmatprep.subr.bf16.mxu0 0
    %122 = vmatpush1.bf16.msra.mxu0 %v91
    %123 = vmatprep.subr.bf16.mxu0 0
    %124 = vmatpush2.bf16.msra.mxu0 0
    %125 = vmatprep.subr.bf16.mxu0 0
    %126 = vmatpush2.bf16.msra.mxu0 0
    %127 = vmatprep.subr.bf16.mxu0 0
    %128 = vmatpush2.bf16.msra.mxu0 0
    %129 = vmatprep.subr.bf16.mxu0 0
    %130 = vmatpush2.bf16.msra.mxu0 0
    %131 = vmatprep.subr.bf16.mxu0 0
    %132 = vmatpush2.bf16.msra.mxu0 0
    %133 = vmatprep.subr.bf16.mxu0 0
    %134 = vmatpush2.bf16.msra.mxu0 0
    %135 = vmatprep.subr.bf16.mxu0 0
    %136 = vmatpush2.bf16.msra.mxu0 0
    %137 = vmatprep.subr.bf16.mxu0 0
    %138 = vmatpush2.bf16.msra.mxu0 0
    %139 = vmatprep.mubr.bf16.mxu0 0
    %140 = vmatmul.mubr.bf16.gmra.mxu0 %v57
    %v141 = vpop.f32.mrf.mxu0
    %v142 = vadd.f32 %v52, %v141
    %v143 = vpop.f32.mrf.mxu0
    %v144 = vpop.f32.mrf.mxu0
    %v145 = vadd.f32 %v52, %v144
    %v146 = vpop.f32.mrf.mxu0
    %147 = vdwg.mxu0
    %v148 = vtanh.pop %v142
    %v149 = vtanh.pop %v145
    %v150 = vpack.c.bf16 %v149, %v148
    %v151 = vld [vmem:[%s3] sm:$0xf]
    %v152 = vld [vmem:[%s3 + $0x4] sm:$0xf]
    %v153 = vld [vmem:[%s3 + $0x8] sm:$0xf]
    %v154 = vld [vmem:[%s3 + $0xc] sm:$0xf]
    %v155 = vld [vmem:[%s3 + $0x10] sm:$0xf]
    %v156 = vld [vmem:[%s3 + $0x14] sm:$0xf]
    %v157 = vld [vmem:[%s3 + $0x18] sm:$0xf]
    %v158 = vld [vmem:[%s3 + $0x1c] sm:$0xf]
    %v159 = vld [vmem:[%s3 + $0x20] sm:$0xf]
    %v160 = vld [vmem:[%s3 + $0x24] sm:$0xf]
    %v161 = vld [vmem:[%s3 + $0x28] sm:$0xf]
    %v162 = vld [vmem:[%s3 + $0x2c] sm:$0xf]
    %v163 = vld [vmem:[%s3 + $0x30] sm:$0xf]
    %v164 = vld [vmem:[%s3 + $0x34] sm:$0xf]
    %v165 = vld [vmem:[%s3 + $0x38] sm:$0xf]
    %v166 = vld [vmem:[%s3 + $0x3c] sm:$0xf]
    %v167 = vlaneseq
    %v168 = vshrl.u32 %v167, 7
    %v169 = vsub.s32 0, %v168
    %v170 = vrot.slane %v29, %v169
    %v187 = vunpack.c.l.b16 %v151
    %v188 = vunpack.c.l.b16 %v152
    %v189 = vunpack.c.l.b16 %v153
    %v190 = vunpack.c.l.b16 %v154
    %v191 = vunpack.c.l.b16 %v155
    %v192 = vunpack.c.l.b16 %v156
    %v193 = vunpack.c.l.b16 %v157
    %v194 = vunpack.c.l.b16 %v158
    %v195 = vunpack.c.l.b16 %v159
    %v196 = vunpack.c.l.b16 %v160
    %v197 = vunpack.c.l.b16 %v161
    %v198 = vunpack.c.l.b16 %v162
    %v199 = vunpack.c.l.b16 %v163
    %v200 = vunpack.c.l.b16 %v164
    %v201 = vunpack.c.l.b16 %v165
    %v202 = vunpack.c.l.b16 %v166
    %v203 = vpack.c.b16 %v188, %v187
    %v204 = vpack.c.b16 %v190, %v189
    %v205 = vpack.c.b16 %v192, %v191
    %v206 = vpack.c.b16 %v194, %v193
    %v207 = vpack.c.b16 %v196, %v195
    %v208 = vpack.c.b16 %v198, %v197
    %v209 = vpack.c.b16 %v200, %v199
    %v210 = vpack.c.b16 %v202, %v201
    %219 = vmatprep.subr.bf16.mxu0 0
    %220 = vmatpush1.bf16.msra.mxu0 %v210
    %221 = vmatprep.subr.bf16.mxu0 0
    %222 = vmatpush1.bf16.msra.mxu0 %v209
    %223 = vmatprep.subr.bf16.mxu0 0
    %224 = vmatpush1.bf16.msra.mxu0 %v208
    %225 = vmatprep.subr.bf16.mxu0 0
    %226 = vmatpush1.bf16.msra.mxu0 %v207
    %227 = vmatprep.subr.bf16.mxu0 0
    %228 = vmatpush1.bf16.msra.mxu0 %v206
    %229 = vmatprep.subr.bf16.mxu0 0
    %230 = vmatpush1.bf16.msra.mxu0 %v205
    %231 = vmatprep.subr.bf16.mxu0 0
    %232 = vmatpush1.bf16.msra.mxu0 %v204
    %233 = vmatprep.subr.bf16.mxu0 0
    %234 = vmatpush1.bf16.msra.mxu0 %v203
    %235 = vmatprep.subr.bf16.mxu0 0
    %236 = vmatpush2.bf16.msra.mxu0 0
    %237 = vmatprep.subr.bf16.mxu0 0
    %238 = vmatpush2.bf16.msra.mxu0 0
    %239 = vmatprep.subr.bf16.mxu0 0
    %240 = vmatpush2.bf16.msra.mxu0 0
    %241 = vmatprep.subr.bf16.mxu0 0
    %242 = vmatpush2.bf16.msra.mxu0 0
    %243 = vmatprep.subr.bf16.mxu0 0
    %244 = vmatpush2.bf16.msra.mxu0 0
    %245 = vmatprep.subr.bf16.mxu0 0
    %246 = vmatpush2.bf16.msra.mxu0 0
    %247 = vmatprep.subr.bf16.mxu0 0
    %248 = vmatpush2.bf16.msra.mxu0 0
    %249 = vmatprep.subr.bf16.mxu0 0
    %250 = vmatpush2.bf16.msra.mxu0 0
    %251 = vmatprep.mubr.bf16.mxu0 0
    %252 = vmatmul.mubr.bf16.gmra.mxu0 %v150
    %v253 = vpop.f32.mrf.mxu0
    %v254 = vadd.f32 %v170, %v253
    %v255 = vpop.f32.mrf.mxu0
    %v256 = vpop.f32.mrf.mxu0
    %v257 = vadd.f32 %v170, %v256
    %v258 = vpop.f32.mrf.mxu0
    %259 = vdwg.mxu0
    %v260 = vtanh.pop %v254
    %v261 = vtanh.pop %v257
    %v262 = vpack.c.bf16 %v261, %v260
    %v263 = vld [vmem:[%s4] sm:$0xf]
    %v264 = vld [vmem:[%s4 + $0x4] sm:$0xf]
    %v265 = vld [vmem:[%s4 + $0x8] sm:$0xf]
    %v266 = vld [vmem:[%s4 + $0xc] sm:$0xf]
    %v267 = vld [vmem:[%s4 + $0x10] sm:$0xf]
    %v268 = vld [vmem:[%s4 + $0x14] sm:$0xf]
    %v269 = vld [vmem:[%s4 + $0x18] sm:$0xf]
    %v270 = vld [vmem:[%s4 + $0x1c] sm:$0xf]
    %v271 = vld [vmem:[%s4 + $0x20] sm:$0xf]
    %v272 = vld [vmem:[%s4 + $0x24] sm:$0xf]
    %v273 = vld [vmem:[%s4 + $0x28] sm:$0xf]
    %v274 = vld [vmem:[%s4 + $0x2c] sm:$0xf]
    %v275 = vld [vmem:[%s4 + $0x30] sm:$0xf]
    %v276 = vld [vmem:[%s4 + $0x34] sm:$0xf]
    %v277 = vld [vmem:[%s4 + $0x38] sm:$0xf]
    %v278 = vld [vmem:[%s4 + $0x3c] sm:$0xf]
    %v279 = vlaneseq
    %v280 = vshrl.u32 %v279, 7
    %v281 = vsub.s32 0, %v280
    %v282 = vrot.slane %v30, %v281
    %v299 = vunpack.c.l.b16 %v263
    %v300 = vunpack.c.l.b16 %v264
    %v301 = vunpack.c.l.b16 %v265
    %v302 = vunpack.c.l.b16 %v266
    %v303 = vunpack.c.l.b16 %v267
    %v304 = vunpack.c.l.b16 %v268
    %v305 = vunpack.c.l.b16 %v269
    %v306 = vunpack.c.l.b16 %v270
    %v307 = vunpack.c.l.b16 %v271
    %v308 = vunpack.c.l.b16 %v272
    %v309 = vunpack.c.l.b16 %v273
    %v310 = vunpack.c.l.b16 %v274
    %v311 = vunpack.c.l.b16 %v275
    %v312 = vunpack.c.l.b16 %v276
    %v313 = vunpack.c.l.b16 %v277
    %v314 = vunpack.c.l.b16 %v278
    %v315 = vpack.c.b16 %v300, %v299
    %v316 = vpack.c.b16 %v302, %v301
    %v317 = vpack.c.b16 %v304, %v303
    %v318 = vpack.c.b16 %v306, %v305
    %v319 = vpack.c.b16 %v308, %v307
    %v320 = vpack.c.b16 %v310, %v309
    %v321 = vpack.c.b16 %v312, %v311
    %v322 = vpack.c.b16 %v314, %v313
    %331 = vmatprep.subr.bf16.mxu0 0
    %332 = vmatpush1.bf16.msra.mxu0 %v322
    %333 = vmatprep.subr.bf16.mxu0 0
    %334 = vmatpush1.bf16.msra.mxu0 %v321
    %335 = vmatprep.subr.bf16.mxu0 0
    %336 = vmatpush1.bf16.msra.mxu0 %v320
    %337 = vmatprep.subr.bf16.mxu0 0
    %338 = vmatpush1.bf16.msra.mxu0 %v319
    %339 = vmatprep.subr.bf16.mxu0 0
    %340 = vmatpush1.bf16.msra.mxu0 %v318
    %341 = vmatprep.subr.bf16.mxu0 0
    %342 = vmatpush1.bf16.msra.mxu0 %v317
    %343 = vmatprep.subr.bf16.mxu0 0
    %344 = vmatpush1.bf16.msra.mxu0 %v316
    %345 = vmatprep.subr.bf16.mxu0 0
    %346 = vmatpush1.bf16.msra.mxu0 %v315
    %347 = vmatprep.subr.bf16.mxu0 0
    %348 = vmatpush2.bf16.msra.mxu0 0
    %349 = vmatprep.subr.bf16.mxu0 0
    %350 = vmatpush2.bf16.msra.mxu0 0
    %351 = vmatprep.subr.bf16.mxu0 0
    %352 = vmatpush2.bf16.msra.mxu0 0
    %353 = vmatprep.subr.bf16.mxu0 0
    %354 = vmatpush2.bf16.msra.mxu0 0
    %355 = vmatprep.subr.bf16.mxu0 0
    %356 = vmatpush2.bf16.msra.mxu0 0
    %357 = vmatprep.subr.bf16.mxu0 0
    %358 = vmatpush2.bf16.msra.mxu0 0
    %359 = vmatprep.subr.bf16.mxu0 0
    %360 = vmatpush2.bf16.msra.mxu0 0
    %361 = vmatprep.subr.bf16.mxu0 0
    %362 = vmatpush2.bf16.msra.mxu0 0
    %363 = vmatprep.mubr.bf16.mxu0 0
    %364 = vmatmul.mubr.bf16.gmra.mxu0 %v262
    %v365 = vpop.f32.mrf.mxu0
    %v366 = vadd.f32 %v282, %v365
    %v367 = vpop.f32.mrf.mxu0
    %v368 = vpop.f32.mrf.mxu0
    %v369 = vadd.f32 %v282, %v368
    %v370 = vpop.f32.mrf.mxu0
    %371 = vdwg.mxu0
    %372 = vst [vmem:[#allocation2] sm:$0xff] %v366
    %373 = vst [vmem:[#allocation2 + $0x8] sm:$0xff] %v369
    %v374 = vlaneseq
    %v375 = vshrl.u32 %v374, 7
    %v376 = vadd.s32 %v375, 8
    %s377 = smul.u32 0, 16
    %v378 = vstv %s377
    %v379 = vadd.s32 %v375, %v378
    %v380 = vadd.s32 %v376, %v378
    %vm381 = vcmp.lt.s32.totalorder %v379, 8
    %vm382 = vcmp.lt.s32.totalorder %v380, 8
    %v383 = vld [vmem:[%s1] sm:$0xff]
    %v384 = vld [vmem:[%s1 + $0x8] sm:$0xff]
    %v385 = vsub.f32 %v383, %v366
    %v386 = vsub.f32 %v384, %v369
    %v387 = vsel %vm381, %v385, 0.0
    %v388 = vsel %vm382, %v386, 0.0
    %v389 = vmul.f32 %v387, %v387
    %v390 = vmul.f32 %v388, %v388
    %v391 = vadd.f32 %v389, %v390
    %392 = vadd.xlane.f32.xlu0 %v391
    %v393 = vpop.xlane.xlu0 %392
    %v394 = vrot.slane %v393, 4
    %v395 = vadd.f32 %v393, %v394
    %v396 = vrot.slane %v395, 2
    %v397 = vadd.f32 %v395, %v396
    %v398 = vrot.slane %v397, 1
    %v399 = vadd.f32 %v397, %v398
    %s400 = vtos %v399
    %s401 = scalar_lea.smem [#allocation5], 0
    %402 = sst [smem:[%s401]] %s400
    // Predicated region
    $region26: #{ff_forward_and_loss.1} parent=1 // pred_check
      _
    $region27: #{ff_forward_and_loss.1} parent=1 // pred_check_branch
      %404 = sbr.rel (0) target = $region29
    $region28: #{ff_forward_and_loss.1} parent=1 // pred_region
      %s406 = ssub.s32 256, 256
      %407 = vsyncadd [#allocation3], %s406
      %s408 = sshll.u32 [#allocation2], 4
      %s409 = int_to_ptr.vmem [resolvable:$true] %s408
      %414 = dma.vmem_to_hbm [thread:$0]  %s409, 256, %s6, [#allocation3], 128, 128, 8
    $region29: #{ff_forward_and_loss.1} parent=1 // pred_fallthru
      _
    // Predicated region
    $region30: #{ff_forward_and_loss.1} parent=1 // pred_check
      _
    $region31: #{ff_forward_and_loss.1} parent=1 // pred_check_branch
      %416 = sbr.rel (0) target = $region33
    $region32: #{ff_forward_and_loss.1} parent=1 // pred_region
      %s418 = ssub.s32 16, 16
      %419 = vsyncadd [#allocation4], %s418
      %422 = dma.smem_to_hbm [#allocation5], 16, %s7, [#allocation4]
    $region33: #{ff_forward_and_loss.1} parent=1 // pred_fallthru
      _
    // Predicated region
    $region34: #{ff_forward_and_loss.1} parent=1 // pred_check
      _
    $region35: #{ff_forward_and_loss.1} parent=1 // pred_check_branch
      %424 = sbr.rel (0) target = $region37
    $region36: #{ff_forward_and_loss.1} parent=1 // pred_region
      %425 = dma.done [#allocation3], 256
    $region37: #{ff_forward_and_loss.1} parent=1 // pred_fallthru
      _
    // Predicated region
    $region38: #{ff_forward_and_loss.1} parent=1 // pred_check
      _
    $region39: #{ff_forward_and_loss.1} parent=1 // pred_check_branch
      %427 = sbr.rel (0) target = $region41
    $region40: #{ff_forward_and_loss.1} parent=1 // pred_region
      %428 = dma.done [#allocation4], 16
    $region41: #{ff_forward_and_loss.1} parent=1 // pred_fallthru
      _
    %429 = sfence
    %430 = vsyncpa [#allocation3], 1
    %431 = vsyncpa [#allocation4], 1

</llo_original>
